<compile_context>
chip_gen: v5e
topology: v5e:2x2
jax: 0.10.0
libtpu: 0.0.40
codegen_flags: <defaults>
</compile_context>

<pallas_src>
import functools

import jax
import jax.numpy as jnp
import numpy as np
from jax.experimental import pallas as pl
from jax.experimental.pallas import tpu as pltpu


def _round_up(x, n):
    return (x + n - 1) // n * n


def _ffn_ln_kernel(x_ref, w1_ref, w2_ref, o_ref, acc_ref, *, d_model, eps):
    # x_ref:   (tm, d_pad)       input rows (also the residual), native dtype
    # w1_ref:  (d_pad, tk)       fc1 weight chunk (pre-transposed)
    # w2_ref:  (tk, d_pad)       fc2 weight chunk (pre-transposed)
    # o_ref:   (tm, d_pad)       output rows
    # acc_ref: (tm, d_pad) f32   running fc2 partial sums over the d_ff axis
    k = pl.program_id(1)

    @pl.when(k == 0)
    def _init():
        acc_ref[...] = jnp.zeros_like(acc_ref)

    x = x_ref[...]

    # fc1 (this d_ff chunk) + ReLU.  Feed the MXU in the native dtype and
    # accumulate in f32 (bf16-in / f32-acc is the MXU peak path).
    h = jnp.dot(x, w1_ref[...], preferred_element_type=jnp.float32)
    h = jnp.maximum(h, 0.0)

    # fc2 partial product, accumulated across d_ff chunks in f32.
    acc_ref[...] += jnp.dot(h.astype(w2_ref.dtype), w2_ref[...],
                            preferred_element_type=jnp.float32)

    @pl.when(k == pl.num_programs(1) - 1)
    def _finalize():
        y = acc_ref[...] + x.astype(jnp.float32)   # residual add (f32)
        d_pad = y.shape[-1]
        inv_d = jnp.float32(1.0 / d_model)
        # Padded lanes of y are exactly zero, so sums over d_pad equal the
        # real sums over d_model.
        mean = jnp.sum(y, axis=-1, keepdims=True) * inv_d
        centered = y - mean
        if d_pad != d_model:
            lane = jax.lax.broadcasted_iota(jnp.int32, y.shape, 1)
            cm = jnp.where(lane < d_model, centered, 0.0)
        else:
            cm = centered
        var = jnp.sum(cm * cm, axis=-1, keepdims=True) * inv_d
        o_ref[...] = (centered * jax.lax.rsqrt(var + eps)).astype(o_ref.dtype)


def _weight_spec(block_shape, index_map, single_buffer):
    if single_buffer:
        # Constant-index resident weights only ever need one VMEM buffer.
        try:
            return pl.BlockSpec(block_shape, index_map,
                                pipeline_mode=pl.Buffered(1))
        except (TypeError, ValueError):
            pass
    return pl.BlockSpec(block_shape, index_map)


def poswise_ffn(x, w1, w2, *, eps=1e-5, tm=None, tk=None):
    """x: [B, S, d_model]; w1: [d_model, d_ff]; w2: [d_ff, d_model]."""
    b, s, d_model = x.shape
    d_ff = w1.shape[1]
    assert w1.shape == (d_model, d_ff) and w2.shape == (d_ff, d_model)
    m = b * s
    x2 = x.reshape(m, d_model)

    # ---- tiled / padded geometry ----------------------------------------
    d_pad = _round_up(d_model, 128)              # lane-dense slab
    if tk is None:
        tk = d_ff if d_ff <= 2048 else 1024      # chunk d_ff for big FFNs
    dff_pad = _round_up(d_ff, tk)
    k_tiles = dff_pad // tk
    w_bufs = 1 if k_tiles == 1 else 2            # weight buffers per operand

    if tm is None:
        tm = min(512, _round_up(m, 8))
    tm = max(8, _round_up(tm, 8))

    def working_set(tm_):
        a_bytes = x2.dtype.itemsize
        w_bytes = w1.dtype.itemsize
        return (2 * tm_ * d_pad * a_bytes        # x tiles (double buffered)
                + 2 * tm_ * d_pad * a_bytes      # out tiles (double buffered)
                + w_bufs * d_pad * tk * w_bytes  # w1 chunk(s)
                + w_bufs * tk * d_pad * w_bytes  # w2 chunk(s)
                + tm_ * d_pad * 4                # f32 accumulator scratch
                + tm_ * tk * 4)                  # f32 h intermediate

    # Keep the working set comfortably inside v7x's 64 MiB VMEM per core.
    while tm > 8 and working_set(tm) > (48 << 20):
        tm = max(8, tm // 2)

    m_pad = _round_up(m, tm)

    # ---- wrapper-side zero padding (keeps the LN math exact; see kernel) -
    if (m_pad, d_pad) != (m, d_model):
        x2 = jnp.pad(x2, ((0, m_pad - m), (0, d_pad - d_model)))
    if (d_pad, dff_pad) != (d_model, d_ff):
        w1 = jnp.pad(w1, ((0, d_pad - d_model), (0, dff_pad - d_ff)))
    if (dff_pad, d_pad) != (d_ff, d_model):
        w2 = jnp.pad(w2, ((0, dff_pad - d_ff), (0, d_pad - d_model)))

    vmem_limit = int(min(64 << 20,
                         max(32 << 20, working_set(tm) * 3 // 2 + (2 << 20))))

    cost = pl.CostEstimate(
        flops=4 * m * d_model * d_ff,            # two matmuls, 2 flops / MAC
        transcendentals=m,                       # one rsqrt per row
        bytes_accessed=(w1.size * w1.dtype.itemsize
                        + w2.size * w2.dtype.itemsize
                        + 2 * m * d_model * x.dtype.itemsize))

    out2 = pl.pallas_call(
        functools.partial(_ffn_ln_kernel, d_model=d_model, eps=eps),
        out_shape=jax.ShapeDtypeStruct((m_pad, d_pad), x.dtype),
        grid_spec=pltpu.PrefetchScalarGridSpec(
            num_scalar_prefetch=0,
            grid=(m_pad // tm, k_tiles),
            in_specs=[
                pl.BlockSpec((tm, d_pad), lambda i, k: (i, 0)),
                _weight_spec((d_pad, tk), lambda i, k: (0, k), k_tiles == 1),
                _weight_spec((tk, d_pad), lambda i, k: (k, 0), k_tiles == 1),
            ],
            out_specs=pl.BlockSpec((tm, d_pad), lambda i, k: (i, 0)),
            scratch_shapes=[pltpu.VMEM((tm, d_pad), jnp.float32)],
        ),
        compiler_params=pltpu.CompilerParams(
            dimension_semantics=("parallel", "arbitrary"),
            vmem_limit_bytes=vmem_limit),
        cost_estimate=cost,
    )(x2, w1, w2)

    return out2[:m, :d_model].reshape(b, s, d_model)


def poswise_ffn_ref(x, w1, w2, eps=1e-5):
    """Pure-JAX reference matching the PyTorch forward."""
    h = jnp.maximum(jnp.dot(x, w1), 0.0)
    y = jnp.dot(h, w2) + x
    mean = jnp.mean(y, axis=-1, keepdims=True)
    var = jnp.mean((y - mean) ** 2, axis=-1, keepdims=True)
    return (y - mean) / jnp.sqrt(var + eps)


if __name__ == "__main__":
    # Small, module-consistent shapes: [batch, seq, d_model], d_ff hidden.
    batch, seq, d_model, d_ff = 2, 8, 32, 64

    key = jax.random.PRNGKey(0)
    kx, k1, k2 = jax.random.split(key, 3)

    x = jax.random.normal(kx, (batch, seq, d_model), dtype=jnp.float32)
    # Linear(d_model, d_ff, bias=False) has weight [d_ff, d_model]; we store
    # the transposed versions used by the kernel.
    w1 = (jax.random.uniform(k1, (d_model, d_ff), dtype=jnp.float32,
                             minval=-1.0, maxval=1.0)
          / jnp.sqrt(jnp.float32(d_model)))
    w2 = (jax.random.uniform(k2, (d_ff, d_model), dtype=jnp.float32,
                             minval=-1.0, maxval=1.0)
          / jnp.sqrt(jnp.float32(d_ff)))

    out = jax.block_until_ready(poswise_ffn(x, w1, w2))

    ref = poswise_ffn_ref(x, w1, w2)
    np.testing.assert_allclose(np.asarray(out), np.asarray(ref),
                               rtol=1e-5, atol=1e-5)

    print("KERNEL_OK")
</pallas_src>

<mosaic_0001>
module attributes {stable_mosaic.version = 11 : i64} {
  func.func @_ffn_ln_kernel(%arg0: i32, %arg1: i32, %arg2: memref<16x128xf32, #tpu.memory_space<vmem>>, %arg3: memref<128x64xf32, #tpu.memory_space<vmem>>, %arg4: memref<64x128xf32, #tpu.memory_space<vmem>>, %arg5: memref<16x128xf32, #tpu.memory_space<vmem>>, %arg6: memref<16x128xf32, #tpu.memory_space<vmem>>) attributes {dimension_semantics = [#tpu.dimension_semantics<parallel>, #tpu.dimension_semantics<arbitrary>], iteration_bounds = array<i64: 1, 1>, scalar_prefetch = 0 : i64, scratch_operands = 1 : i64, tpu.core_type = #tpu.core_type<tc>, window_params = [{transform_indices = @transform_0, window_bounds = array<i64: 16, 128>}, {pipeline_mode = #tpu.pipeline_mode<synchronous>, transform_indices = @transform_1, window_bounds = array<i64: 128, 64>}, {pipeline_mode = #tpu.pipeline_mode<synchronous>, transform_indices = @transform_2, window_bounds = array<i64: 64, 128>}, {transform_indices = @transform_3, window_bounds = array<i64: 16, 128>}]} {
    %c0_i32 = arith.constant 0 : i32
    %0 = arith.cmpi eq, %arg1, %c0_i32 : i32
    %1 = arith.extui %0 : i1 to i32
    %c0_i32_0 = arith.constant 0 : i32
    %2 = arith.cmpi ne, %1, %c0_i32_0 : i32
    scf.if %2 {
      %cst_14 = arith.constant 0.000000e+00 : f32
      %16 = vector.broadcast %cst_14 : f32 to vector<16x128xf32>
      %c0_15 = arith.constant 0 : index
      %c0_16 = arith.constant 0 : index
      %17 = vector.load %arg6[%c0_15, %c0_16] : memref<16x128xf32, #tpu.memory_space<vmem>>, vector<16x128xf32>
      tpu.vector_store %arg6[%c0_15, %c0_16], %16 {strides = array<i32>} : memref<16x128xf32, #tpu.memory_space<vmem>>, vector<16x128xf32>,
    } else {
    }
    %c0 = arith.constant 0 : index
    %c0_1 = arith.constant 0 : index
    %3 = vector.load %arg2[%c0, %c0_1] : memref<16x128xf32, #tpu.memory_space<vmem>>, vector<16x128xf32>
    %c0_2 = arith.constant 0 : index
    %c0_3 = arith.constant 0 : index
    %4 = vector.load %arg3[%c0_2, %c0_3] : memref<128x64xf32, #tpu.memory_space<vmem>>, vector<128x64xf32>
    %cst = arith.constant dense<0.000000e+00> : vector<16x64xf32>
    %5 = tpu.matmul %3, %4, %cst {dimension_numbers = #tpu.dot_dimension_numbers<[1], [0], [0], [1], [0, 0, 1, 1], [], []>} : vector<16x128xf32>, vector<128x64xf32>, vector<16x64xf32> -> vector<16x64xf32>
    %cst_4 = arith.constant 0.000000e+00 : f32
    %6 = vector.broadcast %cst_4 : f32 to vector<16x64xf32>
    %7 = arith.maximumf %5, %6 : vector<16x64xf32>
    %c0_5 = arith.constant 0 : index
    %c0_6 = arith.constant 0 : index
    %8 = vector.load %arg6[%c0_5, %c0_6] : memref<16x128xf32, #tpu.memory_space<vmem>>, vector<16x128xf32>
    %c0_7 = arith.constant 0 : index
    %c0_8 = arith.constant 0 : index
    %9 = vector.load %arg4[%c0_7, %c0_8] : memref<64x128xf32, #tpu.memory_space<vmem>>, vector<64x128xf32>
    %cst_9 = arith.constant dense<0.000000e+00> : vector<16x128xf32>
    %10 = tpu.matmul %7, %9, %cst_9 {dimension_numbers = #tpu.dot_dimension_numbers<[1], [0], [0], [1], [0, 0, 1, 1], [], []>} : vector<16x64xf32>, vector<64x128xf32>, vector<16x128xf32> -> vector<16x128xf32>
    %11 = arith.addf %8, %10 : vector<16x128xf32>
    %c0_10 = arith.constant 0 : index
    %c0_11 = arith.constant 0 : index
    %12 = vector.load %arg6[%c0_10, %c0_11] : memref<16x128xf32, #tpu.memory_space<vmem>>, vector<16x128xf32>
    tpu.vector_store %arg6[%c0_10, %c0_11], %11 {strides = array<i32>} : memref<16x128xf32, #tpu.memory_space<vmem>>, vector<16x128xf32>,
    %c0_i32_12 = arith.constant 0 : i32
    %13 = arith.cmpi eq, %arg1, %c0_i32_12 : i32
    %14 = arith.extui %13 : i1 to i32
    %c0_i32_13 = arith.constant 0 : i32
    %15 = arith.cmpi ne, %14, %c0_i32_13 : i32
    scf.if %15 {
      %c0_14 = arith.constant 0 : index
      %c0_15 = arith.constant 0 : index
      %16 = vector.load %arg6[%c0_14, %c0_15] : memref<16x128xf32, #tpu.memory_space<vmem>>, vector<16x128xf32>
      %17 = arith.addf %16, %3 : vector<16x128xf32>
      %cst_16 = arith.constant dense<0.000000e+00> : vector<16xf32>
      %18 = vector.multi_reduction <add>, %17, %cst_16 [1] : vector<16x128xf32> to vector<16xf32>
      %19 = vector.shape_cast %18 : vector<16xf32> to vector<16x1xf32>
      %cst_17 = arith.constant 3.125000e-02 : f32
      %20 = vector.broadcast %cst_17 : f32 to vector<16x1xf32>
      %21 = arith.mulf %19, %20 : vector<16x1xf32>
      %22 = vector.broadcast %21 : vector<16x1xf32> to vector<16x128xf32>
      %23 = arith.subf %17, %22 : vector<16x128xf32>
      %24 = tpu.iota {dimensions = array<i32: 1>} : vector<16x128xi32>
      %c32_i32 = arith.constant 32 : i32
      %25 = vector.broadcast %c32_i32 : i32 to vector<16x128xi32>
      %26 = arith.cmpi slt, %24, %25 : vector<16x128xi32>
      %cst_18 = arith.constant 0.000000e+00 : f32
      %27 = vector.broadcast %cst_18 : f32 to vector<16x128xf32>
      %28 = arith.select %26, %23, %27 : vector<16x128xi1>, vector<16x128xf32>
      %29 = arith.mulf %28, %28 : vector<16x128xf32>
      %cst_19 = arith.constant dense<0.000000e+00> : vector<16xf32>
      %30 = vector.multi_reduction <add>, %29, %cst_19 [1] : vector<16x128xf32> to vector<16xf32>
      %31 = vector.shape_cast %30 : vector<16xf32> to vector<16x1xf32>
      %cst_20 = arith.constant 3.125000e-02 : f32
      %32 = vector.broadcast %cst_20 : f32 to vector<16x1xf32>
      %33 = arith.mulf %31, %32 : vector<16x1xf32>
      %cst_21 = arith.constant 9.99999974E-6 : f32
      %34 = vector.broadcast %cst_21 : f32 to vector<16x1xf32>
      %35 = arith.addf %33, %34 : vector<16x1xf32>
      %36 = math.rsqrt %35 : vector<16x1xf32>
      %37 = vector.broadcast %36 : vector<16x1xf32> to vector<16x128xf32>
      %38 = arith.mulf %23, %37 : vector<16x128xf32>
      %c0_22 = arith.constant 0 : index
      %c0_23 = arith.constant 0 : index
      %39 = vector.load %arg5[%c0_22, %c0_23] : memref<16x128xf32, #tpu.memory_space<vmem>>, vector<16x128xf32>
      tpu.vector_store %arg5[%c0_22, %c0_23], %38 {strides = array<i32>} : memref<16x128xf32, #tpu.memory_space<vmem>>, vector<16x128xf32>,
    } else {
    }
    return
  }
  func.func @transform_0(%arg0: i32, %arg1: i32) -> (i32, i32) {
    %c0_i32 = arith.constant 0 : i32
    %c0_i32_0 = arith.constant 0 : i32
    return %arg0, %c0_i32 : i32, i32
  }
  func.func @transform_1(%arg0: i32, %arg1: i32) -> (i32, i32) {
    %c0_i32 = arith.constant 0 : i32
    %c0_i32_0 = arith.constant 0 : i32
    return %c0_i32, %arg1 : i32, i32
  }
  func.func @transform_2(%arg0: i32, %arg1: i32) -> (i32, i32) {
    %c0_i32 = arith.constant 0 : i32
    %c0_i32_0 = arith.constant 0 : i32
    return %arg1, %c0_i32 : i32, i32
  }
  func.func @transform_3(%arg0: i32, %arg1: i32) -> (i32, i32) {
    %c0_i32 = arith.constant 0 : i32
    %c0_i32_0 = arith.constant 0 : i32
    return %arg0, %c0_i32 : i32, i32
  }
}

</mosaic_0001>

<llo_original>
// kernel: tpu_custom_call.1
$region0: #{tpu_custom_call.1}
  #allocation0 [shape = 'u32[]', space=smem, size = 0x4, offset = 0x4, fixed_abs, tag = 'smem constant byte address 0x4 - core index']
  #allocation1 [shape = 'u32[72,128]{1,0:T(1,128)}', space=vmem, size = 0x9000, scoped, tag = 'internal scratch']
  #allocation2 [shape = 'f32[16,128]{1,0:T(8,128)}', space=vmem, size = 0x2000, scoped, tag = 'scratch operand']
  %s0 = inlined_call_operand.vmem [shape: f32[16,128], index: 0, kind: input, shape index: {}]
  %s1 = inlined_call_operand.vmem [shape: f32[128,64], index: 1, kind: input, shape index: {}]
  %s2 = inlined_call_operand.vmem [shape: f32[64,128], index: 2, kind: input, shape index: {}]
  %s3 = inlined_call_operand.hbm [shape: f32[16,128], index: 3, kind: output, shape index: {}]
  %s4 = sld [smem:[#allocation0]]
  $region30: #{tpu_custom_call.1} parent=0
    _
  %s6 = ssub.s32 1, %s4
  %s7 = scalar_select 0, %s6, %s4
  $region1: #{tpu_custom_call.1} parent=0
    #allocation3 [shape = 'u8[8192]{0}', space=vmem, size = 0x2000, scoped, tag = 'output window, operand 0, single buffered']
    #allocation4 [shape = 's32[1]{0}', space=sflag, size = 0x4, scoped, tag = 'scoped memory for tpu_custom_call.1']
    %8 = vsyncpa [#allocation4], 0
    // Predicated region
    $region2: #{tpu_custom_call.1} parent=1 // pred_check
      _
    $region3: #{tpu_custom_call.1} parent=1 // pred_check_branch
      %10 = sbr.rel (0) target = $region5
    $region4: #{tpu_custom_call.1} parent=1 // pred_region
      _
    $region5: #{tpu_custom_call.1} parent=1 // pred_fallthru
      _
    // Predicated region
    $region6: #{tpu_custom_call.1} parent=1 // pred_check
      _
    $region7: #{tpu_custom_call.1} parent=1 // pred_check_branch
      %12 = sbr.rel (0) target = $region9
    $region8: #{tpu_custom_call.1} parent=1 // pred_region
      _
    $region9: #{tpu_custom_call.1} parent=1 // pred_fallthru
      _
    // Predicated region
    $region10: #{tpu_custom_call.1} parent=1 // pred_check
      _
    $region11: #{tpu_custom_call.1} parent=1 // pred_check_branch
      %14 = sbr.rel (0) target = $region13
    $region12: #{tpu_custom_call.1} parent=1 // pred_region
      _
    $region13: #{tpu_custom_call.1} parent=1 // pred_fallthru
      _
    %p15 = scmp.eq.s32.totalorder 0, 0
    // Predicated region
    $region14: #{tpu_custom_call.1} parent=1 // pred_check
      %p16 = pneg %p15
    $region15: #{tpu_custom_call.1} parent=1 // pred_check_branch
      %18 = sbr.rel (%p16) target = $region17
    $region16: #{tpu_custom_call.1} parent=1 // pred_region
      %19 = vst [vmem:[#allocation2] sm:$0xff] 0.0
      %20 = vst [vmem:[#allocation2 + $0x8] sm:$0xff] 0.0
    $region17: #{tpu_custom_call.1} parent=1 // pred_fallthru
      _
    %v21 = vld [vmem:[%s0] sm:$0xff]
    %v22 = vld [vmem:[%s0 + $0x8] sm:$0xff]
    %v23 = vld [vmem:[%s1] sm:$0xff]
    %v24 = vld [vmem:[%s1 + $0x8] sm:$0xff]
    %v25 = vld [vmem:[%s1 + $0x10] sm:$0xff]
    %v26 = vld [vmem:[%s1 + $0x18] sm:$0xff]
    %v27 = vld [vmem:[%s1 + $0x20] sm:$0xff]
    %v28 = vld [vmem:[%s1 + $0x28] sm:$0xff]
    %v29 = vld [vmem:[%s1 + $0x30] sm:$0xff]
    %v30 = vld [vmem:[%s1 + $0x38] sm:$0xff]
    %v31 = vld [vmem:[%s1 + $0x40] sm:$0xff]
    %v32 = vld [vmem:[%s1 + $0x48] sm:$0xff]
    %v33 = vld [vmem:[%s1 + $0x50] sm:$0xff]
    %v34 = vld [vmem:[%s1 + $0x58] sm:$0xff]
    %v35 = vld [vmem:[%s1 + $0x60] sm:$0xff]
    %v36 = vld [vmem:[%s1 + $0x68] sm:$0xff]
    %v37 = vld [vmem:[%s1 + $0x70] sm:$0xff]
    %v38 = vld [vmem:[%s1 + $0x78] sm:$0xff]
    %39 = vmatpush.msra.mxu0 %v38
    %40 = vmatpush.msra.mxu0 %v37
    %41 = vmatpush.msra.mxu0 %v36
    %42 = vmatpush.msra.mxu0 %v35
    %43 = vmatpush.msra.mxu0 %v34
    %44 = vmatpush.msra.mxu0 %v33
    %45 = vmatpush.msra.mxu0 %v32
    %46 = vmatpush.msra.mxu0 %v31
    %47 = vmatpush.msra.mxu0 %v30
    %48 = vmatpush.msra.mxu0 %v29
    %49 = vmatpush.msra.mxu0 %v28
    %50 = vmatpush.msra.mxu0 %v27
    %51 = vmatpush.msra.mxu0 %v26
    %52 = vmatpush.msra.mxu0 %v25
    %53 = vmatpush.msra.mxu0 %v24
    %54 = vmatpush.msra.mxu0 %v23
    %55 = vmatmul.f32.gmra.mxu0 %v21
    %v56 = vpop.f32.mrf.mxu0
    %v57 = vadd.f32 0.0, %v56
    %58 = vmatmul.f32.gmra.mxu0 %v22
    %v59 = vpop.f32.mrf.mxu0
    %v60 = vadd.f32 0.0, %v59
    %61 = vdwg.mxu0
    %v62 = vmax.f32 %v57, 0.0
    %v63 = vmax.f32 %v60, 0.0
    %v64 = vld [vmem:[#allocation2] sm:$0xff]
    %v65 = vld [vmem:[#allocation2 + $0x8] sm:$0xff]
    %v66 = vld [vmem:[%s2] sm:$0xff]
    %v67 = vld [vmem:[%s2 + $0x8] sm:$0xff]
    %v68 = vld [vmem:[%s2 + $0x10] sm:$0xff]
    %v69 = vld [vmem:[%s2 + $0x18] sm:$0xff]
    %v70 = vld [vmem:[%s2 + $0x20] sm:$0xff]
    %v71 = vld [vmem:[%s2 + $0x28] sm:$0xff]
    %v72 = vld [vmem:[%s2 + $0x30] sm:$0xff]
    %v73 = vld [vmem:[%s2 + $0x38] sm:$0xff]
    %vm74 = vcmask 523264
    %v76 = vsel %vm74, %v62, 0
    %v79 = vsel %vm74, %v63, 0
    %81 = vmatpush.msra.mxu0 0.0
    %82 = vmatpush.msra.mxu0 0.0
    %83 = vmatpush.msra.mxu0 0.0
    %84 = vmatpush.msra.mxu0 0.0
    %85 = vmatpush.msra.mxu0 0.0
    %86 = vmatpush.msra.mxu0 0.0
    %87 = vmatpush.msra.mxu0 0.0
    %88 = vmatpush.msra.mxu0 0.0
    %89 = vmatpush.msra.mxu0 %v73
    %90 = vmatpush.msra.mxu0 %v72
    %91 = vmatpush.msra.mxu0 %v71
    %92 = vmatpush.msra.mxu0 %v70
    %93 = vmatpush.msra.mxu0 %v69
    %94 = vmatpush.msra.mxu0 %v68
    %95 = vmatpush.msra.mxu0 %v67
    %96 = vmatpush.msra.mxu0 %v66
    %97 = vmatmul.f32.gmra.mxu0 %v76
    %v98 = vpop.f32.mrf.mxu0
    %v99 = vadd.f32 0.0, %v98
    %100 = vmatmul.f32.gmra.mxu0 %v79
    %v101 = vpop.f32.mrf.mxu0
    %v102 = vadd.f32 0.0, %v101
    %103 = vdwg.mxu0
    %v104 = vadd.f32 %v64, %v99
    %v105 = vadd.f32 %v65, %v102
    %106 = vst [vmem:[#allocation2] sm:$0xff] %v104
    %107 = vst [vmem:[#allocation2 + $0x8] sm:$0xff] %v105
    // Predicated region
    $region18: #{tpu_custom_call.1} parent=1 // pred_check
      %p108 = pneg %p15
    $region19: #{tpu_custom_call.1} parent=1 // pred_check_branch
      %110 = sbr.rel (%p108) target = $region21
    $region20: #{tpu_custom_call.1} parent=1 // pred_region
      %v111 = vld [vmem:[#allocation2] sm:$0xff]
      %v112 = vld [vmem:[#allocation2 + $0x8] sm:$0xff]
      %v113 = vadd.f32 %v111, %v21
      %v114 = vadd.f32 %v112, %v22
      %115 = vadd.xlane.f32.xlu0 %v113
      %v116 = vpop.xlane.xlu0 %115
      %117 = vadd.xlane.f32.xlu0 %v114
      %v118 = vpop.xlane.xlu0 %117
      %v119 = vmul.f32 %v116, 0.03125
      %v120 = vmul.f32 %v118, 0.03125
      %v121 = vsub.f32 %v113, %v119
      %v122 = vsub.f32 %v114, %v120
      %v123 = vlaneseq
      %v124 = vand.u32 %v123, 127
      %vm125 = vcmp.lt.s32.totalorder %v124, 32
      %v126 = vsel %vm125, %v121, 0.0
      %v127 = vsel %vm125, %v122, 0.0
      %v128 = vmul.f32 %v126, %v126
      %v129 = vmul.f32 %v127, %v127
      %130 = vadd.xlane.f32.xlu0 %v128
      %v131 = vpop.xlane.xlu0 %130
      %132 = vadd.xlane.f32.xlu0 %v129
      %v133 = vpop.xlane.xlu0 %132
      %v134 = vmul.f32 %v131, 0.03125
      %v135 = vmul.f32 %v133, 0.03125
      %v136 = vadd.f32 %v134, 1e-05
      %v137 = vadd.f32 %v135, 1e-05
      %v138 = vrsqrt.pop %v136
      %v139 = vmul.f32 %v138, %v136
      %v140 = vmul.f32 %v139, %v138
      %v141 = vmul.f32 0.5, %v140
      %v142 = vsub.f32 1.5, %v141
      %v143 = vmul.f32 %v138, %v142
      %vm144 = vweird.f32 %v136
      %vm145 = vweird.f32 %v138
      %vm146 = vmor %vm144, %vm145
      %v147 = vsel %vm146, %v138, %v143
      %v148 = vrsqrt.pop %v137
      %v149 = vmul.f32 %v148, %v137
      %v150 = vmul.f32 %v149, %v148
      %v151 = vmul.f32 0.5, %v150
      %v152 = vsub.f32 1.5, %v151
      %v153 = vmul.f32 %v148, %v152
      %vm154 = vweird.f32 %v137
      %vm155 = vweird.f32 %v148
      %vm156 = vmor %vm154, %vm155
      %v157 = vsel %vm156, %v148, %v153
      %v158 = vmul.f32 %v121, %v147
      %v159 = vmul.f32 %v122, %v157
      %160 = vst [vmem:[#allocation3] sm:$0xff] %v158
      %161 = vst [vmem:[#allocation3 + $0x8] sm:$0xff] %v159
    $region21: #{tpu_custom_call.1} parent=1 // pred_fallthru
      _
    // Predicated region
    $region22: #{tpu_custom_call.1} parent=1 // pred_check
      _
    $region23: #{tpu_custom_call.1} parent=1 // pred_check_branch
      %163 = sbr.rel (0) target = $region25
    $region24: #{tpu_custom_call.1} parent=1 // pred_region
      %165 = vsyncadd [#allocation4], 0
      %s166 = sshll.u32 [#allocation3], 4
      %s167 = int_to_ptr.vmem [resolvable:$true] %s166
      %s168 = sshll.u32 %s3, 4
      %s169 = int_to_ptr.hbm [resolvable:$true] %s168
      %174 = dma.vmem_to_hbm [thread:$0]  %s167, 256, %s169, [#allocation4], 128, 128, 8
    $region25: #{tpu_custom_call.1} parent=1 // pred_fallthru
      _
    // Predicated region
    $region26: #{tpu_custom_call.1} parent=1 // pred_check
      _
    $region27: #{tpu_custom_call.1} parent=1 // pred_check_branch
      %176 = sbr.rel (0) target = $region29
    $region28: #{tpu_custom_call.1} parent=1 // pred_region
      %178 = dma.done [#allocation4], 256
    $region29: #{tpu_custom_call.1} parent=1 // pred_fallthru
      _
    %179 = vsyncpa [#allocation4], 1

</llo_original>
